<compile_context>
chip_gen: v5e
topology: v5e:2x2
jax: 0.10.0
libtpu: 0.0.40
codegen_flags: <defaults>
</compile_context>

<pallas_src>
import functools

import jax
import jax.numpy as jnp
from jax import lax
from jax.experimental import pallas as pl
from jax.experimental.pallas import tpu as pltpu

# Pad value for the ragged N*C tail.  sigmoid(10*(-1e4 - cutoff)) == 0.0
# exactly in f32 (tanh saturates), so padded rows/channels contribute exactly
# zero to all three partial sums.  (Zero-padding would NOT be neutral.)
_PAD_VAL = -1.0e4


def _fss_partial_kernel(label_ref, pred_ref, out_ref, *, mask_size, cutoff,
                        hout, wout, ax_h, ax_w):
    """Per-tile partial sums for the FSS loss.

    Writes an (8, lanes) block:
      row 0: per-lane sum((label_density - pred_density)^2)
      row 1: per-lane sum(label_density^2)
      row 2: per-lane sum(pred_density^2)
      rows 3..7: zero.
    The lane axis is either the pooled width (row layout) or the channel
    block (channel-lane layout); the final lane reduce happens in JAX.
    """
    c = 10.0
    label = label_ref[...].astype(jnp.float32)
    pred = pred_ref[...].astype(jnp.float32)

    # sigmoid(c*(x - cutoff)) == 0.5*(tanh(0.5*c*(x - cutoff)) + 1): the
    # transcendental runs on the EUP (free slot), no f32 VPU divide.
    label_bin = 0.5 * (jnp.tanh(0.5 * c * (label - cutoff)) + 1.0)
    pred_bin = 0.5 * (jnp.tanh(0.5 * c * (pred - cutoff)) + 1.0)

    inv_k2 = 1.0 / float(mask_size * mask_size)

    def pool(x):
        # Separable AvgPool2d(kernel=(k,k), stride=1, no padding): k shifted
        # adds along ax_h then k along ax_w (2k adds instead of k^2).
        v = lax.slice_in_dim(x, 0, hout, axis=ax_h)
        for di in range(1, mask_size):
            v = v + lax.slice_in_dim(x, di, di + hout, axis=ax_h)
        out = lax.slice_in_dim(v, 0, wout, axis=ax_w)
        for dj in range(1, mask_size):
            out = out + lax.slice_in_dim(v, dj, dj + wout, axis=ax_w)
        return out * inv_k2

    label_density = pool(label_bin)
    pred_density = pool(pred_bin)
    diff = label_density - pred_density

    def lane_sum(x):
        # Reduce leading + sublane axes only; keep the lane axis.
        r = jnp.sum(x, axis=0)
        return jnp.sum(r, axis=0, keepdims=True)        # (1, lanes)

    d2 = lane_sum(diff * diff)
    o2 = lane_sum(label_density * label_density)
    m2 = lane_sum(pred_density * pred_density)

    lanes = d2.shape[-1]
    zeros = jnp.zeros((out_ref.shape[0] - 3, lanes), jnp.float32)
    out_ref[...] = jnp.concatenate([d2, o2, m2, zeros], axis=0)


def _cdiv(a, b):
    return -(-a // b)


def _vmem_budgets():
    """(capacity, total scoped budget, per-input tile budget) in bytes."""
    try:
        cap = int(pltpu.get_tpu_info().vmem_capacity_bytes)
    except Exception:
        cap = 64 << 20          # conservative: v7x per-TensorCore VMEM
    budget_total = int(cap * 0.7)       # ~45 MiB on v7x, ~90 MiB on v5e/v6e
    # 2 inputs x 2 pipeline buffers + ~6 f32 intermediates x tile  ->  /12.
    tile_budget = max(budget_total // 12, 1 << 18)
    return cap, budget_total, tile_budget


def _choose_rows(nc, row_bytes, tile_budget):
    """Rows-per-block for the (nc, H, W) layout. No divisibility required."""
    tb = max(1, min(nc, tile_budget // max(row_bytes, 1)))
    if tb >= nc and nc > 1:
        tb = _cdiv(nc, 2)               # at least 2 steps so the pipeline overlaps
    g = _cdiv(nc, tb)
    # Prefer an even step count so v7x's two TensorCores split the parallel
    # axis evenly (no effect on v5e/v6e).
    if g > 1 and g % 2 == 1:
        for cand in range(tb, max(1, tb // 2), -1):
            if _cdiv(nc, cand) % 2 == 0:
                tb = cand
                g = _cdiv(nc, cand)
                break
    return tb, g


def _choose_lane_tile(nc, plane_bytes, tile_budget):
    """Lane-block size (multiple of 128) for the (H, W, nc) layout."""
    max_mult = max(1, tile_budget // max(plane_bytes * 128, 1))
    nc128 = _cdiv(nc, 128)
    mult = min(max_mult, nc128)
    if mult >= nc128 and nc128 > 1:
        mult = _cdiv(nc128, 2)
    g = _cdiv(nc128, mult)
    if g > 1 and g % 2 == 1:
        for cand in range(mult, max(1, mult // 2), -1):
            if _cdiv(nc128, cand) % 2 == 0:
                mult = cand
                g = _cdiv(nc128, cand)
                break
    return mult * 128, g


def fss_loss(label, pred, *, mask_size, cutoff=0.5):
    """Pallas implementation of FSSLoss.forward.

    label, pred: (N, C, H, W) arrays. Returns a scalar float32 loss.
    """
    assert label.shape == pred.shape
    n, ch, h, w = label.shape
    hout = h - mask_size + 1
    wout = w - mask_size + 1
    assert hout >= 1 and wout >= 1, "mask_size larger than spatial dims"

    # Faithfully reproduces PyTorch's `shape[1] * shape[2]` on NCHW density,
    # i.e. channels * pooled_height (NOT the true pixel count).
    n_density_pixels = float(ch * hout)
    total_elems = float(n * ch * hout * wout)

    nc = n * ch
    itemsize = jnp.dtype(label.dtype).itemsize
    _, budget_total, tile_budget = _vmem_budgets()

    plane_bytes = h * w * itemsize
    use_lane_layout = (w < 128) and (nc >= 128) and \
        (plane_bytes * 128 <= tile_budget)

    if use_lane_layout:
        # Channel-lane layout: channels on the 128-lane axis (dense vregs
        # even for tiny W); vertical pool shifts are free leading-axis views.
        tl, g = _choose_lane_tile(nc, plane_bytes, tile_budget)
        nc_pad = g * tl
        lab = jnp.transpose(label.reshape(nc, h, w), (1, 2, 0))
        prd = jnp.transpose(pred.reshape(nc, h, w), (1, 2, 0))
        if nc_pad > nc:
            pad = ((0, 0), (0, 0), (0, nc_pad - nc))
            lab = jnp.pad(lab, pad, constant_values=_PAD_VAL)
            prd = jnp.pad(prd, pad, constant_values=_PAD_VAL)
        block = (h, w, tl)
        index_map = lambda i: (0, 0, i)
        lanes = tl
        ax_h, ax_w = 0, 1
    else:
        # Row layout: (H, W) planes stacked on the leading axis.
        tb, g = _choose_rows(nc, plane_bytes, tile_budget)
        nc_pad = g * tb
        lab = label.reshape(nc, h, w)
        prd = pred.reshape(nc, h, w)
        if nc_pad > nc:
            pad = ((0, nc_pad - nc), (0, 0), (0, 0))
            lab = jnp.pad(lab, pad, constant_values=_PAD_VAL)
            prd = jnp.pad(prd, pad, constant_values=_PAD_VAL)
        block = (tb, h, w)
        index_map = lambda i: (i, 0, 0)
        lanes = wout
        ax_h, ax_w = 1, 2

    kernel = functools.partial(
        _fss_partial_kernel,
        mask_size=mask_size,
        cutoff=float(cutoff),
        hout=hout,
        wout=wout,
        ax_h=ax_h,
        ax_w=ax_w,
    )

    partials = pl.pallas_call(
        kernel,
        out_shape=jax.ShapeDtypeStruct((g * 8, lanes), jnp.float32),
        grid=(g,),
        in_specs=[
            pl.BlockSpec(block, index_map),
            pl.BlockSpec(block, index_map),
        ],
        out_specs=pl.BlockSpec((8, lanes), lambda i: (i, 0)),
        compiler_params=pltpu.CompilerParams(
            dimension_semantics=("parallel",),
            vmem_limit_bytes=budget_total),
    )(lab, prd)

    p = partials.reshape(g, 8, lanes)
    d2_sum = jnp.sum(p[:, 0, :])
    o_sq_sum = jnp.sum(p[:, 1, :])
    m_sq_sum = jnp.sum(p[:, 2, :])

    mse_n = d2_sum / total_elems
    mse_n_ref = (o_sq_sum + m_sq_sum) / n_density_pixels
    eps = 1e-07
    return mse_n / (mse_n_ref + eps)


def _fss_loss_ref(label, pred, *, mask_size, cutoff=0.5):
    """Pure-JAX reference mirroring the PyTorch forward exactly."""
    c = 10.0
    label_bin = jax.nn.sigmoid(c * (label.astype(jnp.float32) - cutoff))
    pred_bin = jax.nn.sigmoid(c * (pred.astype(jnp.float32) - cutoff))
    n, ch, h, w = label.shape
    hout, wout = h - mask_size + 1, w - mask_size + 1

    def pool(x):
        acc = jnp.zeros((n, ch, hout, wout), jnp.float32)
        for di in range(mask_size):
            for dj in range(mask_size):
                acc = acc + x[:, :, di:di + hout, dj:dj + wout]
        return acc / float(mask_size * mask_size)

    ld, pd = pool(label_bin), pool(pred_bin)
    n_density_pixels = float(ch * hout)
    mse_n = jnp.mean((ld - pd) ** 2)
    mse_n_ref = (jnp.sum(ld * ld) + jnp.sum(pd * pd)) / n_density_pixels
    return mse_n / (mse_n_ref + 1e-07)


if __name__ == "__main__":
    key = jax.random.PRNGKey(0)
    keys = jax.random.split(key, 6)

    def check(label, pred, mask_size, cutoff):
        out = jax.block_until_ready(
            fss_loss(label, pred, mask_size=mask_size, cutoff=cutoff))
        ref = jax.block_until_ready(
            _fss_loss_ref(label, pred, mask_size=mask_size, cutoff=cutoff))
        assert jnp.allclose(out, ref, rtol=1e-4, atol=1e-6), (out, ref)

    # 1) Base case: row layout, nc = 8 (even split into 2 grid steps).
    label = jax.random.uniform(keys[0], (2, 4, 16, 16), dtype=jnp.float32)
    pred = jax.random.uniform(keys[1], (2, 4, 16, 16), dtype=jnp.float32)
    check(label, pred, mask_size=4, cutoff=0.5)

    # 2) Ragged nc = 7: exercises the padded-tail (neutral -1e4 pad) path.
    label = jax.random.uniform(keys[2], (1, 7, 16, 16), dtype=jnp.float32)
    pred = jax.random.uniform(keys[3], (1, 7, 16, 16), dtype=jnp.float32)
    check(label, pred, mask_size=2, cutoff=0.5)

    # 3) nc = 160 with W = 16: exercises the channel-lane layout + lane pad.
    label = jax.random.uniform(keys[4], (5, 32, 16, 16), dtype=jnp.float32)
    pred = jax.random.uniform(keys[5], (5, 32, 16, 16), dtype=jnp.float32)
    check(label, pred, mask_size=3, cutoff=0.5)

    print("KERNEL_OK")
</pallas_src>

<mosaic_0001>
module attributes {stable_mosaic.version = 11 : i64} {
  func.func @_fss_partial_kernel(%arg0: i32, %arg1: memref<4x16x16xf32, #tpu.memory_space<vmem>>, %arg2: memref<4x16x16xf32, #tpu.memory_space<vmem>>, %arg3: memref<8x13xf32, #tpu.memory_space<vmem>>) attributes {dimension_semantics = [#tpu.dimension_semantics<parallel>], iteration_bounds = array<i64: 2>, scalar_prefetch = 0 : i64, scratch_operands = 0 : i64, tpu.core_type = #tpu.core_type<tc>, window_params = [{transform_indices = @transform_0, window_bounds = array<i64: 4, 16, 16>}, {transform_indices = @transform_1, window_bounds = array<i64: 4, 16, 16>}, {transform_indices = @transform_2, window_bounds = array<i64: 8, 13>}]} {
    %c0 = arith.constant 0 : index
    %c0_0 = arith.constant 0 : index
    %c0_1 = arith.constant 0 : index
    %0 = vector.load %arg1[%c0, %c0_0, %c0_1] : memref<4x16x16xf32, #tpu.memory_space<vmem>>, vector<4x16x16xf32>
    %c0_2 = arith.constant 0 : index
    %c0_3 = arith.constant 0 : index
    %c0_4 = arith.constant 0 : index
    %1 = vector.load %arg2[%c0_2, %c0_3, %c0_4] : memref<4x16x16xf32, #tpu.memory_space<vmem>>, vector<4x16x16xf32>
    %cst = arith.constant 5.000000e-01 : f32
    %2 = vector.broadcast %cst : f32 to vector<4x16x16xf32>
    %3 = arith.subf %0, %2 : vector<4x16x16xf32>
    %cst_5 = arith.constant 5.000000e+00 : f32
    %4 = vector.broadcast %cst_5 : f32 to vector<4x16x16xf32>
    %5 = arith.mulf %4, %3 : vector<4x16x16xf32>
    %6 = math.tanh %5 : vector<4x16x16xf32>
    %cst_6 = arith.constant 1.000000e+00 : f32
    %7 = vector.broadcast %cst_6 : f32 to vector<4x16x16xf32>
    %8 = arith.addf %6, %7 : vector<4x16x16xf32>
    %cst_7 = arith.constant 5.000000e-01 : f32
    %9 = vector.broadcast %cst_7 : f32 to vector<4x16x16xf32>
    %10 = arith.mulf %9, %8 : vector<4x16x16xf32>
    %cst_8 = arith.constant 5.000000e-01 : f32
    %11 = vector.broadcast %cst_8 : f32 to vector<4x16x16xf32>
    %12 = arith.subf %1, %11 : vector<4x16x16xf32>
    %cst_9 = arith.constant 5.000000e+00 : f32
    %13 = vector.broadcast %cst_9 : f32 to vector<4x16x16xf32>
    %14 = arith.mulf %13, %12 : vector<4x16x16xf32>
    %15 = math.tanh %14 : vector<4x16x16xf32>
    %cst_10 = arith.constant 1.000000e+00 : f32
    %16 = vector.broadcast %cst_10 : f32 to vector<4x16x16xf32>
    %17 = arith.addf %15, %16 : vector<4x16x16xf32>
    %cst_11 = arith.constant 5.000000e-01 : f32
    %18 = vector.broadcast %cst_11 : f32 to vector<4x16x16xf32>
    %19 = arith.mulf %18, %17 : vector<4x16x16xf32>
    %20 = vector.extract_strided_slice %10 {offsets = [0, 0, 0], sizes = [4, 13, 16], strides = [1, 1, 1]} : vector<4x16x16xf32> to vector<4x13x16xf32>
    %21 = vector.extract_strided_slice %10 {offsets = [0, 1, 0], sizes = [4, 13, 16], strides = [1, 1, 1]} : vector<4x16x16xf32> to vector<4x13x16xf32>
    %22 = arith.addf %20, %21 : vector<4x13x16xf32>
    %23 = vector.extract_strided_slice %10 {offsets = [0, 2, 0], sizes = [4, 13, 16], strides = [1, 1, 1]} : vector<4x16x16xf32> to vector<4x13x16xf32>
    %24 = arith.addf %22, %23 : vector<4x13x16xf32>
    %25 = vector.extract_strided_slice %10 {offsets = [0, 3, 0], sizes = [4, 13, 16], strides = [1, 1, 1]} : vector<4x16x16xf32> to vector<4x13x16xf32>
    %26 = arith.addf %24, %25 : vector<4x13x16xf32>
    %27 = vector.extract_strided_slice %26 {offsets = [0, 0, 0], sizes = [4, 13, 13], strides = [1, 1, 1]} : vector<4x13x16xf32> to vector<4x13x13xf32>
    %28 = vector.extract_strided_slice %26 {offsets = [0, 0, 1], sizes = [4, 13, 13], strides = [1, 1, 1]} : vector<4x13x16xf32> to vector<4x13x13xf32>
    %29 = arith.addf %27, %28 : vector<4x13x13xf32>
    %30 = vector.extract_strided_slice %26 {offsets = [0, 0, 2], sizes = [4, 13, 13], strides = [1, 1, 1]} : vector<4x13x16xf32> to vector<4x13x13xf32>
    %31 = arith.addf %29, %30 : vector<4x13x13xf32>
    %32 = vector.extract_strided_slice %26 {offsets = [0, 0, 3], sizes = [4, 13, 13], strides = [1, 1, 1]} : vector<4x13x16xf32> to vector<4x13x13xf32>
    %33 = arith.addf %31, %32 : vector<4x13x13xf32>
    %cst_12 = arith.constant 6.250000e-02 : f32
    %34 = vector.broadcast %cst_12 : f32 to vector<4x13x13xf32>
    %35 = arith.mulf %33, %34 : vector<4x13x13xf32>
    %36 = vector.extract_strided_slice %19 {offsets = [0, 0, 0], sizes = [4, 13, 16], strides = [1, 1, 1]} : vector<4x16x16xf32> to vector<4x13x16xf32>
    %37 = vector.extract_strided_slice %19 {offsets = [0, 1, 0], sizes = [4, 13, 16], strides = [1, 1, 1]} : vector<4x16x16xf32> to vector<4x13x16xf32>
    %38 = arith.addf %36, %37 : vector<4x13x16xf32>
    %39 = vector.extract_strided_slice %19 {offsets = [0, 2, 0], sizes = [4, 13, 16], strides = [1, 1, 1]} : vector<4x16x16xf32> to vector<4x13x16xf32>
    %40 = arith.addf %38, %39 : vector<4x13x16xf32>
    %41 = vector.extract_strided_slice %19 {offsets = [0, 3, 0], sizes = [4, 13, 16], strides = [1, 1, 1]} : vector<4x16x16xf32> to vector<4x13x16xf32>
    %42 = arith.addf %40, %41 : vector<4x13x16xf32>
    %43 = vector.extract_strided_slice %42 {offsets = [0, 0, 0], sizes = [4, 13, 13], strides = [1, 1, 1]} : vector<4x13x16xf32> to vector<4x13x13xf32>
    %44 = vector.extract_strided_slice %42 {offsets = [0, 0, 1], sizes = [4, 13, 13], strides = [1, 1, 1]} : vector<4x13x16xf32> to vector<4x13x13xf32>
    %45 = arith.addf %43, %44 : vector<4x13x13xf32>
    %46 = vector.extract_strided_slice %42 {offsets = [0, 0, 2], sizes = [4, 13, 13], strides = [1, 1, 1]} : vector<4x13x16xf32> to vector<4x13x13xf32>
    %47 = arith.addf %45, %46 : vector<4x13x13xf32>
    %48 = vector.extract_strided_slice %42 {offsets = [0, 0, 3], sizes = [4, 13, 13], strides = [1, 1, 1]} : vector<4x13x16xf32> to vector<4x13x13xf32>
    %49 = arith.addf %47, %48 : vector<4x13x13xf32>
    %cst_13 = arith.constant 6.250000e-02 : f32
    %50 = vector.broadcast %cst_13 : f32 to vector<4x13x13xf32>
    %51 = arith.mulf %49, %50 : vector<4x13x13xf32>
    %52 = arith.subf %35, %51 : vector<4x13x13xf32>
    %53 = arith.mulf %52, %52 : vector<4x13x13xf32>
    %cst_14 = arith.constant dense<0.000000e+00> : vector<13x13xf32>
    %54 = vector.multi_reduction <add>, %53, %cst_14 [0] : vector<4x13x13xf32> to vector<13x13xf32>
    %cst_15 = arith.constant dense<0.000000e+00> : vector<13xf32>
    %55 = vector.multi_reduction <add>, %54, %cst_15 [0] : vector<13x13xf32> to vector<13xf32>
    %56 = vector.shape_cast %55 : vector<13xf32> to vector<1x13xf32>
    %57 = arith.mulf %35, %35 : vector<4x13x13xf32>
    %cst_16 = arith.constant dense<0.000000e+00> : vector<13x13xf32>
    %58 = vector.multi_reduction <add>, %57, %cst_16 [0] : vector<4x13x13xf32> to vector<13x13xf32>
    %cst_17 = arith.constant dense<0.000000e+00> : vector<13xf32>
    %59 = vector.multi_reduction <add>, %58, %cst_17 [0] : vector<13x13xf32> to vector<13xf32>
    %60 = vector.shape_cast %59 : vector<13xf32> to vector<1x13xf32>
    %61 = arith.mulf %51, %51 : vector<4x13x13xf32>
    %cst_18 = arith.constant dense<0.000000e+00> : vector<13x13xf32>
    %62 = vector.multi_reduction <add>, %61, %cst_18 [0] : vector<4x13x13xf32> to vector<13x13xf32>
    %cst_19 = arith.constant dense<0.000000e+00> : vector<13xf32>
    %63 = vector.multi_reduction <add>, %62, %cst_19 [0] : vector<13x13xf32> to vector<13xf32>
    %64 = vector.shape_cast %63 : vector<13xf32> to vector<1x13xf32>
    %cst_20 = arith.constant 0.000000e+00 : f32
    %65 = vector.broadcast %cst_20 : f32 to vector<5x13xf32>
    %66 = tpu.concatenate %56, %60, %64, %65 in 0 : vector<1x13xf32>, vector<1x13xf32>, vector<1x13xf32>, vector<5x13xf32> -> vector<8x13xf32>
    %c0_21 = arith.constant 0 : index
    %c0_22 = arith.constant 0 : index
    %67 = vector.load %arg3[%c0_21, %c0_22] : memref<8x13xf32, #tpu.memory_space<vmem>>, vector<8x13xf32>
    tpu.vector_store %arg3[%c0_21, %c0_22], %66 {strides = array<i32>} : memref<8x13xf32, #tpu.memory_space<vmem>>, vector<8x13xf32>,
    return
  }
  func.func @transform_0(%arg0: i32) -> (i32, i32, i32) {
    %c0_i32 = arith.constant 0 : i32
    %c0_i32_0 = arith.constant 0 : i32
    %c0_i32_1 = arith.constant 0 : i32
    return %arg0, %c0_i32, %c0_i32_0 : i32, i32, i32
  }
  func.func @transform_1(%arg0: i32) -> (i32, i32, i32) {
    %c0_i32 = arith.constant 0 : i32
    %c0_i32_0 = arith.constant 0 : i32
    %c0_i32_1 = arith.constant 0 : i32
    return %arg0, %c0_i32, %c0_i32_0 : i32, i32, i32
  }
  func.func @transform_2(%arg0: i32) -> (i32, i32) {
    %c0_i32 = arith.constant 0 : i32
    %c0_i32_0 = arith.constant 0 : i32
    return %arg0, %c0_i32 : i32, i32
  }
}

</mosaic_0001>

<llo_original>
// kernel: tpu_custom_call.1
$region0: #{tpu_custom_call.1}
  #allocation0 [shape = 'u32[]', space=smem, size = 0x4, offset = 0x4, fixed_abs, tag = 'smem constant byte address 0x4 - core index']
  #allocation1 [shape = 'u32[72,128]{1,0:T(1,128)}', space=vmem, size = 0x9000, scoped, tag = 'internal scratch']
  %s0 = inlined_call_operand.hbm [shape: f32[8,16,16], index: 0, kind: input, shape index: {}]
  %s1 = inlined_call_operand.hbm [shape: f32[8,16,16], index: 1, kind: input, shape index: {}]
  %s2 = inlined_call_operand.hbm [shape: f32[16,13], index: 2, kind: output, shape index: {}]
  %s3 = sld [smem:[#allocation0]]
  $region49: #{tpu_custom_call.1} parent=0
    _
  %s5 = ssub.s32 1, %s3
  %s6 = scalar_select 0, %s5, %s3
  $region1: #{tpu_custom_call.1} parent=0
    #allocation2 [shape = 'u8[65536]{0}', space=vmem, size = 0x10000, scoped, tag = 'input window, operand 0']
    #allocation3 [shape = 's32[2]{0}', space=sflag, size = 0x8, scoped, tag = 'scoped memory for tpu_custom_call.1']
    #allocation4 [shape = 's32[2]{0}', space=sflag, size = 0x8, scoped, tag = 'scoped memory for tpu_custom_call.1']
    #allocation5 [shape = 'u8[65536]{0}', space=vmem, size = 0x10000, scoped, tag = 'input window, operand 1']
    #allocation6 [shape = 's32[2]{0}', space=sflag, size = 0x8, scoped, tag = 'scoped memory for tpu_custom_call.1']
    #allocation7 [shape = 'u8[8192]{0}', space=vmem, size = 0x2000, scoped, tag = 'output window, operand 0']
    %7 = vsyncpa [#allocation3], 0
    %s8 = scalar_lea.sflag [#allocation3], 1
    %9 = vsyncpa %s8, 0
    %10 = vsyncpa [#allocation6], 0
    %s11 = scalar_lea.sflag [#allocation6], 1
    %12 = vsyncpa %s11, 0
    %13 = vsyncpa [#allocation4], 0
    %s14 = scalar_lea.sflag [#allocation4], 1
    %15 = vsyncpa %s14, 0
    loop: start=0, step=1, limit=4
    $region2: #{tpu_custom_call.1} parent=1 // loop_pre_header
      _
    $region3: #{tpu_custom_call.1} parent=1 // loop_header
      %s17 = sphi 0, %s21
      %p18 = scmp.ge.s32.totalorder %s17, 4
      %s27 = sphi 0, %s29
      %s30 = sphi 0, %s27
      %s31 = sphi 0, %s30
      %s47 = sphi 0, %s31
      %s53 = sphi 0, %s55
      %s56 = sphi 0, %s53
      %s57 = sphi 0, %s56
      %s73 = sphi 0, %s57
      %s79 = sphi 0, %s81
      %s82 = sphi 0, %s79
      %s83 = sphi 0, %s82
      %s99 = sphi 0, %s83
    $region4: #{tpu_custom_call.1} parent=1 // loop_header_branch
      %20 = sbr.rel (%p18) target = $region8
    $region5: #{tpu_custom_call.1} parent=1 // loop_body
      %s22 = ssub.s32 %s17, 1
      %s23 = ssub.s32 %s17, 2
      %s24 = sadd.s32 %s17, 1
      %s25 = ssub.s32 %s17, %s24
      %p26 = scmp.eq.s32.totalorder %s25, 0
      %s28 = sadd.s32 %s27, 1
      %s29 = scalar_select %p26, %s27, %s28
      %p32 = pneg %p26
      %p33 = scmp.eq.s32.totalorder %s17, 1
      %p34 = por %p32, %p33
      %p35 = scmp.ne.s32.totalorder %s27, %s30
      %p36 = scmp.eq.s32.totalorder %s17, 0
      %p37 = por %p35, %p36
      %p38 = scmp.ne.s32.totalorder %s27, %s30
      %p39 = scmp.eq.s32.totalorder %s22, 1
      %p40 = por %p38, %p39
      %p41 = scmp.ne.s32.totalorder %s30, %s31
      %p42 = scmp.eq.s32.totalorder %s22, 0
      %p43 = por %p41, %p42
      %p44 = scmp.ne.s32.totalorder %s30, %s31
      %p45 = scmp.eq.s32.totalorder %s23, 1
      %p46 = por %p44, %p45
      %p48 = scmp.ne.s32.totalorder %s31, %s47
      %p49 = scmp.eq.s32.totalorder %s23, 0
      %p50 = por %p48, %p49
      %s51 = ssub.s32 %s17, %s24
      %p52 = scmp.eq.s32.totalorder %s51, 0
      %s54 = sadd.s32 %s53, 1
      %s55 = scalar_select %p52, %s53, %s54
      %p58 = pneg %p52
      %p59 = scmp.eq.s32.totalorder %s17, 1
      %p60 = por %p58, %p59
      %p61 = scmp.ne.s32.totalorder %s53, %s56
      %p62 = scmp.eq.s32.totalorder %s17, 0
      %p63 = por %p61, %p62
      %p64 = scmp.ne.s32.totalorder %s53, %s56
      %p65 = scmp.eq.s32.totalorder %s22, 1
      %p66 = por %p64, %p65
      %p67 = scmp.ne.s32.totalorder %s56, %s57
      %p68 = scmp.eq.s32.totalorder %s22, 0
      %p69 = por %p67, %p68
      %p70 = scmp.ne.s32.totalorder %s56, %s57
      %p71 = scmp.eq.s32.totalorder %s23, 1
      %p72 = por %p70, %p71
      %p74 = scmp.ne.s32.totalorder %s57, %s73
      %p75 = scmp.eq.s32.totalorder %s23, 0
      %p76 = por %p74, %p75
      %s77 = ssub.s32 %s17, %s24
      %p78 = scmp.eq.s32.totalorder %s77, 0
      %s80 = sadd.s32 %s79, 1
      %s81 = scalar_select %p78, %s79, %s80
      %p84 = pneg %p78
      %p85 = scmp.eq.s32.totalorder %s17, 1
      %p86 = por %p84, %p85
      %p87 = scmp.ne.s32.totalorder %s79, %s82
      %p88 = scmp.eq.s32.totalorder %s17, 0
      %p89 = por %p87, %p88
      %p90 = scmp.ne.s32.totalorder %s79, %s82
      %p91 = scmp.eq.s32.totalorder %s22, 1
      %p92 = por %p90, %p91
      %p93 = scmp.ne.s32.totalorder %s82, %s83
      %p94 = scmp.eq.s32.totalorder %s22, 0
      %p95 = por %p93, %p94
      %p96 = scmp.ne.s32.totalorder %s82, %s83
      %p97 = scmp.eq.s32.totalorder %s23, 1
      %p98 = por %p96, %p97
      %p100 = scmp.ne.s32.totalorder %s83, %s99
      %p101 = scmp.eq.s32.totalorder %s23, 0
      %p102 = por %p100, %p101
      %p103 = scmp.le.s32.totalorder 1, %s17
      %p104 = scmp.lt.s32.totalorder %s17, 3
      %p105 = pnand %p103, %p104
      %p106 = pneg %p105
      // Predicated region
      $region9: #{tpu_custom_call.1} parent=5 // pred_check
        _
      $region10: #{tpu_custom_call.1} parent=5 // pred_check_branch
        %108 = sbr.rel (%p105) target = $region12
      $region11: #{tpu_custom_call.1} parent=5 // pred_region
        %s109 = ssub.s32 %s17, 1
      $region12: #{tpu_custom_call.1} parent=5 // pred_fallthru
        _
      %p110 = scmp.lt.s32.totalorder %s17, 2
      // Predicated region
      $region13: #{tpu_custom_call.1} parent=5 // pred_check
        %p111 = pneg %p110
      $region14: #{tpu_custom_call.1} parent=5 // pred_check_branch
        %113 = sbr.rel (%p111) target = $region16
      $region15: #{tpu_custom_call.1} parent=5 // pred_region
        // Predicated region
        $region17: #{tpu_custom_call.1} parent=15 // pred_check
          %p114 = pneg %p37
        $region18: #{tpu_custom_call.1} parent=15 // pred_check_branch
          %116 = sbr.rel (%p114) target = $region20
        $region19: #{tpu_custom_call.1} parent=15 // pred_region
          %s117 = sand.u32 %s27, 1
          %s118 = scalar_lea.sflag [#allocation3], %s117
          %s119 = sand.u32 %s27, 1
          %s120 = smul.addr %s119, 64
          %s121 = scalar_lea.vmem [#allocation2], %s120
          %s122 = smul.u32 4, %s17
          %124 = vsyncadd %s118, 0
          %s125 = smul.addr %s122, 2
          %s126 = smul.addr %s125, 8
          %s127 = scalar_lea.hbm %s0, %s126
          %s128 = sshll.u32 %s127, 4
          %s129 = int_to_ptr.hbm [resolvable:$true] %s128
          %s130 = sshll.u32 %s121, 4
          %s131 = int_to_ptr.vmem [resolvable:$true] %s130
          %136 = dma.hbm_to_vmem [thread:$0]  %s129, 1024, %s131, %s118, 128, 128, 8
        $region20: #{tpu_custom_call.1} parent=15 // pred_fallthru
          _
        // Predicated region
        $region21: #{tpu_custom_call.1} parent=15 // pred_check
          %p137 = pneg %p63
        $region22: #{tpu_custom_call.1} parent=15 // pred_check_branch
          %139 = sbr.rel (%p137) target = $region24
        $region23: #{tpu_custom_call.1} parent=15 // pred_region
          %s140 = sand.u32 %s53, 1
          %s141 = scalar_lea.sflag [#allocation6], %s140
          %s142 = sand.u32 %s53, 1
          %s143 = smul.addr %s142, 64
          %s144 = scalar_lea.vmem [#allocation5], %s143
          %s145 = smul.u32 4, %s17
          %147 = vsyncadd %s141, 0
          %s148 = smul.addr %s145, 2
          %s149 = smul.addr %s148, 8
          %s150 = scalar_lea.hbm %s1, %s149
          %s151 = sshll.u32 %s150, 4
          %s152 = int_to_ptr.hbm [resolvable:$true] %s151
          %s153 = sshll.u32 %s144, 4
          %s154 = int_to_ptr.vmem [resolvable:$true] %s153
          %159 = dma.hbm_to_vmem [thread:$0]  %s152, 1024, %s154, %s141, 128, 128, 8
        $region24: #{tpu_custom_call.1} parent=15 // pred_fallthru
          _
      $region16: #{tpu_custom_call.1} parent=5 // pred_fallthru
        _
      %p160 = scmp.le.s32.totalorder 1, %s17
      %p161 = scmp.lt.s32.totalorder %s17, 3
      %p162 = pnand %p160, %p161
      %p163 = pneg %p162
      // Predicated region
      $region25: #{tpu_custom_call.1} parent=5 // pred_check
        _
      $region26: #{tpu_custom_call.1} parent=5 // pred_check_branch
        %165 = sbr.rel (%p162) target = $region28
      $region27: #{tpu_custom_call.1} parent=5 // pred_region
        %s166 = ssub.s32 %s17, 1
        %s167 = sand.u32 %s30, 1
        %s168 = scalar_lea.sflag [#allocation3], %s167
        %s169 = sand.u32 %s30, 1
        %s170 = smul.addr %s169, 64
        %s171 = scalar_lea.vmem [#allocation2], %s170
        // Predicated region
        $region29: #{tpu_custom_call.1} parent=27 // pred_check
          %p172 = pneg %p43
        $region30: #{tpu_custom_call.1} parent=27 // pred_check_branch
          %174 = sbr.rel (%p172) target = $region32
        $region31: #{tpu_custom_call.1} parent=27 // pred_region
          %176 = dma.done %s168, 1024
        $region32: #{tpu_custom_call.1} parent=27 // pred_fallthru
          _
        %s177 = sand.u32 %s56, 1
        %s178 = scalar_lea.sflag [#allocation6], %s177
        %s179 = sand.u32 %s56, 1
        %s180 = smul.addr %s179, 64
        %s181 = scalar_lea.vmem [#allocation5], %s180
        // Predicated region
        $region33: #{tpu_custom_call.1} parent=27 // pred_check
          %p182 = pneg %p69
        $region34: #{tpu_custom_call.1} parent=27 // pred_check_branch
          %184 = sbr.rel (%p182) target = $region36
        $region35: #{tpu_custom_call.1} parent=27 // pred_region
          %186 = dma.done %s178, 1024
        $region36: #{tpu_custom_call.1} parent=27 // pred_fallthru
          _
        %s187 = sand.u32 %s30, 1
        %s188 = scalar_lea.sflag [#allocation3], %s187
        %s189 = sand.u32 %s30, 1
        %s190 = smul.addr %s189, 64
        %s191 = scalar_lea.vmem [#allocation2], %s190
        %p192 = pneg %p43
        %p193 = pneg %p40
        %s194 = sand.u32 %s56, 1
        %s195 = scalar_lea.sflag [#allocation6], %s194
        %s196 = sand.u32 %s56, 1
        %s197 = smul.addr %s196, 64
        %s198 = scalar_lea.vmem [#allocation5], %s197
        %p199 = pneg %p69
        %p200 = pneg %p66
        %p201 = pneg %p95
        %p202 = pneg %p92
        %s203 = sand.u32 %s82, 1
        %s204 = scalar_lea.sflag [#allocation4], %s203
        %s205 = sand.u32 %s82, 1
        %s206 = smul.addr %s205, 8
        %s207 = scalar_lea.vmem [#allocation7], %s206
        %s208 = smul.u32 4, %s22
        %s209 = smul.u32 4, %s22
        %v210 = vld [vmem:[%s171] sm:$0xff]
        %v211 = vld [vmem:[%s171 + $0x8] sm:$0xff]
        %v212 = vld [vmem:[%s171 + $0x10] sm:$0xff]
        %v213 = vld [vmem:[%s171 + $0x18] sm:$0xff]
        %v214 = vld [vmem:[%s171 + $0x20] sm:$0xff]
        %v215 = vld [vmem:[%s171 + $0x28] sm:$0xff]
        %v216 = vld [vmem:[%s171 + $0x30] sm:$0xff]
        %v217 = vld [vmem:[%s171 + $0x38] sm:$0xff]
        %v218 = vld [vmem:[%s181] sm:$0xff]
        %v219 = vld [vmem:[%s181 + $0x8] sm:$0xff]
        %v220 = vld [vmem:[%s181 + $0x10] sm:$0xff]
        %v221 = vld [vmem:[%s181 + $0x18] sm:$0xff]
        %v222 = vld [vmem:[%s181 + $0x20] sm:$0xff]
        %v223 = vld [vmem:[%s181 + $0x28] sm:$0xff]
        %v224 = vld [vmem:[%s181 + $0x30] sm:$0xff]
        %v225 = vld [vmem:[%s181 + $0x38] sm:$0xff]
        %v226 = vsub.f32 %v210, 0.5
        %v227 = vsub.f32 %v211, 0.5
        %v228 = vsub.f32 %v212, 0.5
        %v229 = vsub.f32 %v213, 0.5
        %v230 = vsub.f32 %v214, 0.5
        %v231 = vsub.f32 %v215, 0.5
        %v232 = vsub.f32 %v216, 0.5
        %v233 = vsub.f32 %v217, 0.5
        %v234 = vmul.f32 %v226, 5.0
        %v235 = vmul.f32 %v227, 5.0
        %v236 = vmul.f32 %v228, 5.0
        %v237 = vmul.f32 %v229, 5.0
        %v238 = vmul.f32 %v230, 5.0
        %v239 = vmul.f32 %v231, 5.0
        %v240 = vmul.f32 %v232, 5.0
        %v241 = vmul.f32 %v233, 5.0
        %v242 = vtanh.pop %v234
        %v243 = vtanh.pop %v235
        %v244 = vtanh.pop %v236
        %v245 = vtanh.pop %v237
        %v246 = vtanh.pop %v238
        %v247 = vtanh.pop %v239
        %v248 = vtanh.pop %v240
        %v249 = vtanh.pop %v241
        %v250 = vadd.f32 %v242, 1.0
        %v251 = vadd.f32 %v243, 1.0
        %v252 = vadd.f32 %v244, 1.0
        %v253 = vadd.f32 %v245, 1.0
        %v254 = vadd.f32 %v246, 1.0
        %v255 = vadd.f32 %v247, 1.0
        %v256 = vadd.f32 %v248, 1.0
        %v257 = vadd.f32 %v249, 1.0
        %v258 = vmul.f32 %v250, 0.5
        %v259 = vmul.f32 %v251, 0.5
        %v260 = vmul.f32 %v252, 0.5
        %v261 = vmul.f32 %v253, 0.5
        %v262 = vmul.f32 %v254, 0.5
        %v263 = vmul.f32 %v255, 0.5
        %v264 = vmul.f32 %v256, 0.5
        %v265 = vmul.f32 %v257, 0.5
        %v266 = vsub.f32 %v218, 0.5
        %v267 = vsub.f32 %v219, 0.5
        %v268 = vsub.f32 %v220, 0.5
        %v269 = vsub.f32 %v221, 0.5
        %v270 = vsub.f32 %v222, 0.5
        %v271 = vsub.f32 %v223, 0.5
        %v272 = vsub.f32 %v224, 0.5
        %v273 = vsub.f32 %v225, 0.5
        %v274 = vmul.f32 %v266, 5.0
        %v275 = vmul.f32 %v267, 5.0
        %v276 = vmul.f32 %v268, 5.0
        %v277 = vmul.f32 %v269, 5.0
        %v278 = vmul.f32 %v270, 5.0
        %v279 = vmul.f32 %v271, 5.0
        %v280 = vmul.f32 %v272, 5.0
        %v281 = vmul.f32 %v273, 5.0
        %v282 = vtanh.pop %v274
        %v283 = vtanh.pop %v275
        %v284 = vtanh.pop %v276
        %v285 = vtanh.pop %v277
        %v286 = vtanh.pop %v278
        %v287 = vtanh.pop %v279
        %v288 = vtanh.pop %v280
        %v289 = vtanh.pop %v281
        %v290 = vadd.f32 %v282, 1.0
        %v291 = vadd.f32 %v283, 1.0
        %v292 = vadd.f32 %v284, 1.0
        %v293 = vadd.f32 %v285, 1.0
        %v294 = vadd.f32 %v286, 1.0
        %v295 = vadd.f32 %v287, 1.0
        %v296 = vadd.f32 %v288, 1.0
        %v297 = vadd.f32 %v289, 1.0
        %v298 = vmul.f32 %v290, 0.5
        %v299 = vmul.f32 %v291, 0.5
        %v300 = vmul.f32 %v292, 0.5
        %v301 = vmul.f32 %v293, 0.5
        %v302 = vmul.f32 %v294, 0.5
        %v303 = vmul.f32 %v295, 0.5
        %v304 = vmul.f32 %v296, 0.5
        %v305 = vmul.f32 %v297, 0.5
        %vm314 = vcmask 1046528
        %v315 = vrot.slane %v258, 1
        %v316 = vrot.slane %v259, 1
        %v317 = vsel %vm314, %v315, %v316
        %v318 = vrot.slane %v260, 1
        %v319 = vrot.slane %v261, 1
        %v320 = vsel %vm314, %v318, %v319
        %v321 = vrot.slane %v262, 1
        %v322 = vrot.slane %v263, 1
        %v323 = vsel %vm314, %v321, %v322
        %v324 = vrot.slane %v264, 1
        %v325 = vrot.slane %v265, 1
        %v326 = vsel %vm314, %v324, %v325
        %v335 = vadd.f32 %v258, %v317
        %v336 = vadd.f32 %v259, %v316
        %v337 = vadd.f32 %v260, %v320
        %v338 = vadd.f32 %v261, %v319
        %v339 = vadd.f32 %v262, %v323
        %v340 = vadd.f32 %v263, %v322
        %v341 = vadd.f32 %v264, %v326
        %v342 = vadd.f32 %v265, %v325
        %vm343 = vcmask 1045504
        %v344 = vrot.slane %v258, 2
        %v345 = vrot.slane %v259, 2
        %v346 = vsel %vm343, %v344, %v345
        %v347 = vrot.slane %v260, 2
        %v348 = vrot.slane %v261, 2
        %v349 = vsel %vm343, %v347, %v348
        %v350 = vrot.slane %v262, 2
        %v351 = vrot.slane %v263, 2
        %v352 = vsel %vm343, %v350, %v351
        %v353 = vrot.slane %v264, 2
        %v354 = vrot.slane %v265, 2
        %v355 = vsel %vm343, %v353, %v354
        %v364 = vadd.f32 %v335, %v346
        %v365 = vadd.f32 %v336, %v345
        %v366 = vadd.f32 %v337, %v349
        %v367 = vadd.f32 %v338, %v348
        %v368 = vadd.f32 %v339, %v352
        %v369 = vadd.f32 %v340, %v351
        %v370 = vadd.f32 %v341, %v355
        %v371 = vadd.f32 %v342, %v354
        %vm372 = vcmask 1044480
        %v373 = vrot.slane %v258, 3
        %v374 = vrot.slane %v259, 3
        %v375 = vsel %vm372, %v373, %v374
        %v376 = vrot.slane %v260, 3
        %v377 = vrot.slane %v261, 3
        %v378 = vsel %vm372, %v376, %v377
        %v379 = vrot.slane %v262, 3
        %v380 = vrot.slane %v263, 3
        %v381 = vsel %vm372, %v379, %v380
        %v382 = vrot.slane %v264, 3
        %v383 = vrot.slane %v265, 3
        %v384 = vsel %vm372, %v382, %v383
        %v393 = vadd.f32 %v364, %v375
        %v394 = vadd.f32 %v365, %v374
        %v395 = vadd.f32 %v366, %v378
        %v396 = vadd.f32 %v367, %v377
        %v397 = vadd.f32 %v368, %v381
        %v398 = vadd.f32 %v369, %v380
        %v399 = vadd.f32 %v370, %v384
        %v400 = vadd.f32 %v371, %v383
        %409 = vrot.lane.b32.xlu0 %v393, 127
        %v410 = vpop.permute.xlu0 %409
        %411 = vrot.lane.b32.xlu0 %v394, 127
        %v412 = vpop.permute.xlu0 %411
        %413 = vrot.lane.b32.xlu0 %v395, 127
        %v414 = vpop.permute.xlu0 %413
        %415 = vrot.lane.b32.xlu0 %v396, 127
        %v416 = vpop.permute.xlu0 %415
        %417 = vrot.lane.b32.xlu0 %v397, 127
        %v418 = vpop.permute.xlu0 %417
        %419 = vrot.lane.b32.xlu0 %v398, 127
        %v420 = vpop.permute.xlu0 %419
        %421 = vrot.lane.b32.xlu0 %v399, 127
        %v422 = vpop.permute.xlu0 %421
        %423 = vrot.lane.b32.xlu0 %v400, 127
        %v424 = vpop.permute.xlu0 %423
        %v433 = vadd.f32 %v393, %v410
        %v434 = vadd.f32 %v394, %v412
        %v435 = vadd.f32 %v395, %v414
        %v436 = vadd.f32 %v396, %v416
        %v437 = vadd.f32 %v397, %v418
        %v438 = vadd.f32 %v398, %v420
        %v439 = vadd.f32 %v399, %v422
        %v440 = vadd.f32 %v400, %v424
        %441 = vrot.lane.b32.xlu0 %v393, 126
        %v442 = vpop.permute.xlu0 %441
        %443 = vrot.lane.b32.xlu0 %v394, 126
        %v444 = vpop.permute.xlu0 %443
        %445 = vrot.lane.b32.xlu0 %v395, 126
        %v446 = vpop.permute.xlu0 %445
        %447 = vrot.lane.b32.xlu0 %v396, 126
        %v448 = vpop.permute.xlu0 %447
        %449 = vrot.lane.b32.xlu0 %v397, 126
        %v450 = vpop.permute.xlu0 %449
        %451 = vrot.lane.b32.xlu0 %v398, 126
        %v452 = vpop.permute.xlu0 %451
        %453 = vrot.lane.b32.xlu0 %v399, 126
        %v454 = vpop.permute.xlu0 %453
        %455 = vrot.lane.b32.xlu0 %v400, 126
        %v456 = vpop.permute.xlu0 %455
        %v465 = vadd.f32 %v433, %v442
        %v466 = vadd.f32 %v434, %v444
        %v467 = vadd.f32 %v435, %v446
        %v468 = vadd.f32 %v436, %v448
        %v469 = vadd.f32 %v437, %v450
        %v470 = vadd.f32 %v438, %v452
        %v471 = vadd.f32 %v439, %v454
        %v472 = vadd.f32 %v440, %v456
        %473 = vrot.lane.b32.xlu0 %v393, 125
        %v474 = vpop.permute.xlu0 %473
        %475 = vrot.lane.b32.xlu0 %v394, 125
        %v476 = vpop.permute.xlu0 %475
        %477 = vrot.lane.b32.xlu0 %v395, 125
        %v478 = vpop.permute.xlu0 %477
        %479 = vrot.lane.b32.xlu0 %v396, 125
        %v480 = vpop.permute.xlu0 %479
        %481 = vrot.lane.b32.xlu0 %v397, 125
        %v482 = vpop.permute.xlu0 %481
        %483 = vrot.lane.b32.xlu0 %v398, 125
        %v484 = vpop.permute.xlu0 %483
        %485 = vrot.lane.b32.xlu0 %v399, 125
        %v486 = vpop.permute.xlu0 %485
        %487 = vrot.lane.b32.xlu0 %v400, 125
        %v488 = vpop.permute.xlu0 %487
        %v497 = vadd.f32 %v465, %v474
        %v498 = vadd.f32 %v466, %v476
        %v499 = vadd.f32 %v467, %v478
        %v500 = vadd.f32 %v468, %v480
        %v501 = vadd.f32 %v469, %v482
        %v502 = vadd.f32 %v470, %v484
        %v503 = vadd.f32 %v471, %v486
        %v504 = vadd.f32 %v472, %v488
        %v505 = vmul.f32 %v497, 0.0625
        %v506 = vmul.f32 %v498, 0.0625
        %v507 = vmul.f32 %v499, 0.0625
        %v508 = vmul.f32 %v500, 0.0625
        %v509 = vmul.f32 %v501, 0.0625
        %v510 = vmul.f32 %v502, 0.0625
        %v511 = vmul.f32 %v503, 0.0625
        %v512 = vmul.f32 %v504, 0.0625
        %v521 = vrot.slane %v298, 1
        %v522 = vrot.slane %v299, 1
        %v523 = vsel %vm314, %v521, %v522
        %v524 = vrot.slane %v300, 1
        %v525 = vrot.slane %v301, 1
        %v526 = vsel %vm314, %v524, %v525
        %v527 = vrot.slane %v302, 1
        %v528 = vrot.slane %v303, 1
        %v529 = vsel %vm314, %v527, %v528
        %v530 = vrot.slane %v304, 1
        %v531 = vrot.slane %v305, 1
        %v532 = vsel %vm314, %v530, %v531
        %v541 = vadd.f32 %v298, %v523
        %v542 = vadd.f32 %v299, %v522
        %v543 = vadd.f32 %v300, %v526
        %v544 = vadd.f32 %v301, %v525
        %v545 = vadd.f32 %v302, %v529
        %v546 = vadd.f32 %v303, %v528
        %v547 = vadd.f32 %v304, %v532
        %v548 = vadd.f32 %v305, %v531
        %v549 = vrot.slane %v298, 2
        %v550 = vrot.slane %v299, 2
        %v551 = vsel %vm343, %v549, %v550
        %v552 = vrot.slane %v300, 2
        %v553 = vrot.slane %v301, 2
        %v554 = vsel %vm343, %v552, %v553
        %v555 = vrot.slane %v302, 2
        %v556 = vrot.slane %v303, 2
        %v557 = vsel %vm343, %v555, %v556
        %v558 = vrot.slane %v304, 2
        %v559 = vrot.slane %v305, 2
        %v560 = vsel %vm343, %v558, %v559
        %v569 = vadd.f32 %v541, %v551
        %v570 = vadd.f32 %v542, %v550
        %v571 = vadd.f32 %v543, %v554
        %v572 = vadd.f32 %v544, %v553
        %v573 = vadd.f32 %v545, %v557
        %v574 = vadd.f32 %v546, %v556
        %v575 = vadd.f32 %v547, %v560
        %v576 = vadd.f32 %v548, %v559
        %v577 = vrot.slane %v298, 3
        %v578 = vrot.slane %v299, 3
        %v579 = vsel %vm372, %v577, %v578
        %v580 = vrot.slane %v300, 3
        %v581 = vrot.slane %v301, 3
        %v582 = vsel %vm372, %v580, %v581
        %v583 = vrot.slane %v302, 3
        %v584 = vrot.slane %v303, 3
        %v585 = vsel %vm372, %v583, %v584
        %v586 = vrot.slane %v304, 3
        %v587 = vrot.slane %v305, 3
        %v588 = vsel %vm372, %v586, %v587
        %v597 = vadd.f32 %v569, %v579
        %v598 = vadd.f32 %v570, %v578
        %v599 = vadd.f32 %v571, %v582
        %v600 = vadd.f32 %v572, %v581
        %v601 = vadd.f32 %v573, %v585
        %v602 = vadd.f32 %v574, %v584
        %v603 = vadd.f32 %v575, %v588
        %v604 = vadd.f32 %v576, %v587
        %613 = vrot.lane.b32.xlu0 %v597, 127
        %v614 = vpop.permute.xlu0 %613
        %615 = vrot.lane.b32.xlu0 %v598, 127
        %v616 = vpop.permute.xlu0 %615
        %617 = vrot.lane.b32.xlu0 %v599, 127
        %v618 = vpop.permute.xlu0 %617
        %619 = vrot.lane.b32.xlu0 %v600, 127
        %v620 = vpop.permute.xlu0 %619
        %621 = vrot.lane.b32.xlu0 %v601, 127
        %v622 = vpop.permute.xlu0 %621
        %623 = vrot.lane.b32.xlu0 %v602, 127
        %v624 = vpop.permute.xlu0 %623
        %625 = vrot.lane.b32.xlu0 %v603, 127
        %v626 = vpop.permute.xlu0 %625
        %627 = vrot.lane.b32.xlu0 %v604, 127
        %v628 = vpop.permute.xlu0 %627
        %v637 = vadd.f32 %v597, %v614
        %v638 = vadd.f32 %v598, %v616
        %v639 = vadd.f32 %v599, %v618
        %v640 = vadd.f32 %v600, %v620
        %v641 = vadd.f32 %v601, %v622
        %v642 = vadd.f32 %v602, %v624
        %v643 = vadd.f32 %v603, %v626
        %v644 = vadd.f32 %v604, %v628
        %645 = vrot.lane.b32.xlu0 %v597, 126
        %v646 = vpop.permute.xlu0 %645
        %647 = vrot.lane.b32.xlu0 %v598, 126
        %v648 = vpop.permute.xlu0 %647
        %649 = vrot.lane.b32.xlu0 %v599, 126
        %v650 = vpop.permute.xlu0 %649
        %651 = vrot.lane.b32.xlu0 %v600, 126
        %v652 = vpop.permute.xlu0 %651
        %653 = vrot.lane.b32.xlu0 %v601, 126
        %v654 = vpop.permute.xlu0 %653
        %655 = vrot.lane.b32.xlu0 %v602, 126
        %v656 = vpop.permute.xlu0 %655
        %657 = vrot.lane.b32.xlu0 %v603, 126
        %v658 = vpop.permute.xlu0 %657
        %659 = vrot.lane.b32.xlu0 %v604, 126
        %v660 = vpop.permute.xlu0 %659
        %v669 = vadd.f32 %v637, %v646
        %v670 = vadd.f32 %v638, %v648
        %v671 = vadd.f32 %v639, %v650
        %v672 = vadd.f32 %v640, %v652
        %v673 = vadd.f32 %v641, %v654
        %v674 = vadd.f32 %v642, %v656
        %v675 = vadd.f32 %v643, %v658
        %v676 = vadd.f32 %v644, %v660
        %677 = vrot.lane.b32.xlu0 %v597, 125
        %v678 = vpop.permute.xlu0 %677
        %679 = vrot.lane.b32.xlu0 %v598, 125
        %v680 = vpop.permute.xlu0 %679
        %681 = vrot.lane.b32.xlu0 %v599, 125
        %v682 = vpop.permute.xlu0 %681
        %683 = vrot.lane.b32.xlu0 %v600, 125
        %v684 = vpop.permute.xlu0 %683
        %685 = vrot.lane.b32.xlu0 %v601, 125
        %v686 = vpop.permute.xlu0 %685
        %687 = vrot.lane.b32.xlu0 %v602, 125
        %v688 = vpop.permute.xlu0 %687
        %689 = vrot.lane.b32.xlu0 %v603, 125
        %v690 = vpop.permute.xlu0 %689
        %691 = vrot.lane.b32.xlu0 %v604, 125
        %v692 = vpop.permute.xlu0 %691
        %v701 = vadd.f32 %v669, %v678
        %v702 = vadd.f32 %v670, %v680
        %v703 = vadd.f32 %v671, %v682
        %v704 = vadd.f32 %v672, %v684
        %v705 = vadd.f32 %v673, %v686
        %v706 = vadd.f32 %v674, %v688
        %v707 = vadd.f32 %v675, %v690
        %v708 = vadd.f32 %v676, %v692
        %v709 = vmul.f32 %v701, 0.0625
        %v710 = vmul.f32 %v702, 0.0625
        %v711 = vmul.f32 %v703, 0.0625
        %v712 = vmul.f32 %v704, 0.0625
        %v713 = vmul.f32 %v705, 0.0625
        %v714 = vmul.f32 %v706, 0.0625
        %v715 = vmul.f32 %v707, 0.0625
        %v716 = vmul.f32 %v708, 0.0625
        %v717 = vsub.f32 %v505, %v709
        %v718 = vsub.f32 %v506, %v710
        %v719 = vsub.f32 %v507, %v711
        %v720 = vsub.f32 %v508, %v712
        %v721 = vsub.f32 %v509, %v713
        %v722 = vsub.f32 %v510, %v714
        %v723 = vsub.f32 %v511, %v715
        %v724 = vsub.f32 %v512, %v716
        %v725 = vmul.f32 %v717, %v717
        %v726 = vmul.f32 %v718, %v718
        %v727 = vmul.f32 %v719, %v719
        %v728 = vmul.f32 %v720, %v720
        %v729 = vmul.f32 %v721, %v721
        %v730 = vmul.f32 %v722, %v722
        %v731 = vmul.f32 %v723, %v723
        %v732 = vmul.f32 %v724, %v724
        %vm733 = vcmask 105472
        %v734 = vsel %vm733, %v725, 0.0
        %v735 = vsel %vm733, %v727, 0.0
        %v736 = vadd.f32 %v734, %v735
        %v737 = vsel %vm733, %v729, 0.0
        %v738 = vadd.f32 %v736, %v737
        %v739 = vsel %vm733, %v731, 0.0
        %v740 = vadd.f32 %v738, %v739
        %vm741 = vcmask 102400
        %v742 = vsel %vm741, %v726, 0.0
        %v743 = vsel %vm741, %v728, 0.0
        %v744 = vadd.f32 %v742, %v743
        %v745 = vsel %vm741, %v730, 0.0
        %v746 = vadd.f32 %v744, %v745
        %v747 = vsel %vm741, %v732, 0.0
        %v748 = vadd.f32 %v746, %v747
        %v749 = vsel %vm733, %v740, 0.0
        %v750 = vsel %vm741, %v748, 0.0
        %v751 = vadd.f32 %v749, %v750
        %v752 = vrot.slane %v751, 4
        %v753 = vadd.f32 %v751, %v752
        %v754 = vrot.slane %v753, 2
        %v755 = vadd.f32 %v753, %v754
        %v756 = vrot.slane %v755, 1
        %v757 = vadd.f32 %v755, %v756
        %v758 = vmul.f32 %v505, %v505
        %v759 = vmul.f32 %v506, %v506
        %v760 = vmul.f32 %v507, %v507
        %v761 = vmul.f32 %v508, %v508
        %v762 = vmul.f32 %v509, %v509
        %v763 = vmul.f32 %v510, %v510
        %v764 = vmul.f32 %v511, %v511
        %v765 = vmul.f32 %v512, %v512
        %v766 = vsel %vm733, %v758, 0.0
        %v767 = vsel %vm733, %v760, 0.0
        %v768 = vadd.f32 %v766, %v767
        %v769 = vsel %vm733, %v762, 0.0
        %v770 = vadd.f32 %v768, %v769
        %v771 = vsel %vm733, %v764, 0.0
        %v772 = vadd.f32 %v770, %v771
        %v773 = vsel %vm741, %v759, 0.0
        %v774 = vsel %vm741, %v761, 0.0
        %v775 = vadd.f32 %v773, %v774
        %v776 = vsel %vm741, %v763, 0.0
        %v777 = vadd.f32 %v775, %v776
        %v778 = vsel %vm741, %v765, 0.0
        %v779 = vadd.f32 %v777, %v778
        %v780 = vsel %vm733, %v772, 0.0
        %v781 = vsel %vm741, %v779, 0.0
        %v782 = vadd.f32 %v780, %v781
        %v783 = vrot.slane %v782, 4
        %v784 = vadd.f32 %v782, %v783
        %v785 = vrot.slane %v784, 2
        %v786 = vadd.f32 %v784, %v785
        %v787 = vrot.slane %v786, 1
        %v788 = vadd.f32 %v786, %v787
        %v789 = vmul.f32 %v709, %v709
        %v790 = vmul.f32 %v710, %v710
        %v791 = vmul.f32 %v711, %v711
        %v792 = vmul.f32 %v712, %v712
        %v793 = vmul.f32 %v713, %v713
        %v794 = vmul.f32 %v714, %v714
        %v795 = vmul.f32 %v715, %v715
        %v796 = vmul.f32 %v716, %v716
        %v797 = vsel %vm733, %v789, 0.0
        %v798 = vsel %vm733, %v791, 0.0
        %v799 = vadd.f32 %v797, %v798
        %v800 = vsel %vm733, %v793, 0.0
        %v801 = vadd.f32 %v799, %v800
        %v802 = vsel %vm733, %v795, 0.0
        %v803 = vadd.f32 %v801, %v802
        %v804 = vsel %vm741, %v790, 0.0
        %v805 = vsel %vm741, %v792, 0.0
        %v806 = vadd.f32 %v804, %v805
        %v807 = vsel %vm741, %v794, 0.0
        %v808 = vadd.f32 %v806, %v807
        %v809 = vsel %vm741, %v796, 0.0
        %v810 = vadd.f32 %v808, %v809
        %v811 = vsel %vm733, %v803, 0.0
        %v812 = vsel %vm741, %v810, 0.0
        %v813 = vadd.f32 %v811, %v812
        %v814 = vrot.slane %v813, 4
        %v815 = vadd.f32 %v813, %v814
        %v816 = vrot.slane %v815, 2
        %v817 = vadd.f32 %v815, %v816
        %v818 = vrot.slane %v817, 1
        %v819 = vadd.f32 %v817, %v818
        %vm820 = vcmask 1040384
        %v821 = vsel %vm820, %v757, %v788
        %vm822 = vcmask 1041408
        %v823 = vsel %vm822, %v821, %v819
        %vm824 = vcmask 1042432
        %v825 = vsel %vm824, %v823, 0.0
        %826 = vst.msk [vmem:[%s207] sm:$0xff] %vm733, %v825
        %s827 = sand.u32 %s82, 1
        %s828 = scalar_lea.sflag [#allocation4], %s827
        %s829 = sand.u32 %s82, 1
        %s830 = smul.addr %s829, 8
        %s831 = scalar_lea.vmem [#allocation7], %s830
        // Predicated region
        $region37: #{tpu_custom_call.1} parent=27 // pred_check
          %p832 = pneg %p92
        $region38: #{tpu_custom_call.1} parent=27 // pred_check_branch
          %834 = sbr.rel (%p832) target = $region40
        $region39: #{tpu_custom_call.1} parent=27 // pred_region
          %836 = vsyncadd %s828, 0
          %s837 = smul.addr %s22, 8
          %s838 = scalar_lea.hbm %s2, %s837
          %s840 = sshll.u32 %s831, 4
          %s841 = int_to_ptr.vmem [resolvable:$true] %s840
          %s842 = sshll.u32 %s838, 4
          %s843 = int_to_ptr.hbm [resolvable:$true] %s842
          %845 = dma.vmem_to_hbm [thread:$0]  %s841, 128, %s843, %s828
        $region40: #{tpu_custom_call.1} parent=27 // pred_fallthru
          _
      $region28: #{tpu_custom_call.1} parent=5 // pred_fallthru
        _
      %p846 = scmp.le.s32.totalorder 2, %s17
      // Predicated region
      $region41: #{tpu_custom_call.1} parent=5 // pred_check
        %p847 = pneg %p846
      $region42: #{tpu_custom_call.1} parent=5 // pred_check_branch
        %849 = sbr.rel (%p847) target = $region44
      $region43: #{tpu_custom_call.1} parent=5 // pred_region
        %s850 = ssub.s32 %s17, 2
        // Predicated region
        $region45: #{tpu_custom_call.1} parent=43 // pred_check
          %p851 = pneg %p98
        $region46: #{tpu_custom_call.1} parent=43 // pred_check_branch
          %853 = sbr.rel (%p851) target = $region48
        $region47: #{tpu_custom_call.1} parent=43 // pred_region
          %s854 = sand.u32 %s83, 1
          %s855 = scalar_lea.sflag [#allocation4], %s854
          %s856 = sand.u32 %s83, 1
          %s857 = smul.addr %s856, 8
          %s858 = scalar_lea.vmem [#allocation7], %s857
          %860 = dma.done %s855, 128
        $region48: #{tpu_custom_call.1} parent=43 // pred_fallthru
          _
      $region44: #{tpu_custom_call.1} parent=5 // pred_fallthru
        _
    $region6: #{tpu_custom_call.1} parent=1 // loop_footer
      %s21 = sadd.s32 1, %s17
    $region7: #{tpu_custom_call.1} parent=1 // loop_footer_branch
      %16 = sbr.rel target = $region3
    $region8: #{tpu_custom_call.1} parent=1 // loop_exit
      _
    %861 = vsyncpa [#allocation3], 1
    %s862 = scalar_lea.sflag [#allocation3], 1
    %863 = vsyncpa %s862, 1
    %864 = vsyncpa [#allocation6], 1
    %s865 = scalar_lea.sflag [#allocation6], 1
    %866 = vsyncpa %s865, 1
    %867 = vsyncpa [#allocation4], 1
    %s868 = scalar_lea.sflag [#allocation4], 1
    %869 = vsyncpa %s868, 1

</llo_original>
